<compile_context>
chip_gen: v7x
topology: tpu7x:2x2x1
jax: 0.10.0
libtpu: 0.0.40
codegen_flags: <defaults>
</compile_context>

<pallas_src>
import jax
import jax.numpy as jnp
from jax.experimental import pallas as pl
from jax.experimental.pallas import tpu as pltpu


def _softmax_times_x(x, z):
    # x, z: (TM, HW) float32.  Exact softmax over the last axis of z, times x.
    m = jnp.max(z, axis=-1, keepdims=True)
    e = jnp.exp(z - m)
    denom = jnp.sum(e, axis=-1, keepdims=True)
    return (e / denom) * x          # exact division: matches torch softmax


def _fovea_kernel_plain(x_ref, o_ref):
    x = x_ref[...].astype(jnp.float32)                 # (TM, HW)
    o_ref[...] = _softmax_times_x(x, x).astype(o_ref.dtype)


def _fovea_kernel_smooth(smooth_ref, x_ref, o_ref):
    x = x_ref[...].astype(jnp.float32)                 # (TM, HW)
    z = x * smooth_ref[0]                              # SMEM scalar temperature
    o_ref[...] = _softmax_times_x(x, z).astype(o_ref.dtype)


def _derive_tiling(rows, hw, itemsize, *, tm_cap=1024, min_steps=8):
    """Pick the row tile TM and a matching vmem limit."""
    align = max(8, 32 // itemsize)             # sublane multiple for this dtype
    try:
        vmem_cap = int(pltpu.get_tpu_info().vmem_capacity_bytes)
    except Exception:
        vmem_cap = 64 << 20                    # v7x per-TensorCore floor
    # Footprint target: double-buffered in+out tiles plus ~3 f32 tile-sized
    # softmax temporaries (z/e copies + reduction headroom).
    budget = min(int(vmem_cap * 0.7), 48 << 20)
    per_row = 4 * hw * itemsize + 3 * hw * 4
    tm = max(1, budget // per_row)
    tm = min(tm, tm_cap)
    # Keep >= min_steps grid steps when rows allow (megacore + DMA overlap).
    if rows >= min_steps * align:
        tm = min(tm, rows // min_steps)
    if tm >= rows:
        tm = rows                               # single full block: always legal
    else:
        tm = max(align, (tm // align) * align)  # sublane-aligned partial tiling
        tm = min(tm, rows)
    footprint = per_row * tm
    vmem_limit = min(vmem_cap, max(footprint + footprint // 2, 16 << 20))
    return tm, vmem_limit


def fovea(x, smooth_param=None, *, tm_cap=1024, min_steps=8):
    """Fovea.forward.  x: (B, C, H, W). smooth_param: None or array of shape (1,)."""
    b, c, h, w = x.shape
    hw = h * w
    rows = b * c
    itemsize = jnp.dtype(x.dtype).itemsize

    tm, vmem_limit = _derive_tiling(rows, hw, itemsize,
                                    tm_cap=tm_cap, min_steps=min_steps)

    x2 = x.reshape(rows, hw)                   # contiguous view, no copy
    grid = (pl.cdiv(rows, tm),)

    x_spec = pl.BlockSpec((tm, hw), lambda i: (i, 0))
    o_spec = pl.BlockSpec((tm, hw), lambda i: (i, 0))
    out_shape = jax.ShapeDtypeStruct((rows, hw), x.dtype)

    n_elem = rows * hw
    cost = pl.CostEstimate(flops=6 * n_elem,
                           transcendentals=n_elem,
                           bytes_accessed=2 * n_elem * itemsize)
    cparams = pltpu.CompilerParams(
        dimension_semantics=("parallel",),
        vmem_limit_bytes=int(vmem_limit))

    if smooth_param is None:
        out2 = pl.pallas_call(
            _fovea_kernel_plain,
            out_shape=out_shape,
            grid=grid,
            in_specs=[x_spec],
            out_specs=o_spec,
            compiler_params=cparams,
            cost_estimate=cost,
        )(x2)
    else:
        scale = jnp.asarray(smooth_param, jnp.float32).reshape(1)
        out2 = pl.pallas_call(
            _fovea_kernel_smooth,
            out_shape=out_shape,
            grid=grid,
            in_specs=[pl.BlockSpec(memory_space=pltpu.MemorySpace.SMEM),  # scalar
                      x_spec],
            out_specs=o_spec,
            compiler_params=cparams,
            cost_estimate=cost,
        )(scale, x2)

    return out2.reshape(b, c, h, w)


def fovea_ref(x, smooth_param=None):
    b, c, h, w = x.shape
    xf = x.reshape(b, c, h * w).astype(jnp.float32)
    z = xf * jnp.asarray(smooth_param, jnp.float32).reshape(1) if smooth_param is not None else xf
    mask = jax.nn.softmax(z, axis=-1)
    return (mask * xf).astype(x.dtype).reshape(b, c, h, w)


if __name__ == "__main__":
    # Deterministic parameter init per module __init__: smooth = zeros(1) + 10.0
    smooth = jnp.zeros((1,), jnp.float32) + 10.0

    cases = [
        (2, 4, 16, 16),    # H*W multiple of 128, single row block
        (2, 3, 10, 10),    # ragged H*W (block last dim == full array dim)
        (2, 37, 16, 16),   # multi-step grid with a partial last row block
    ]

    key = jax.random.PRNGKey(0)
    for shape in cases:
        key, sub = jax.random.split(key)
        x = jax.random.normal(sub, shape, dtype=jnp.float32)

        out_plain = fovea(x, smooth_param=None)
        out_smooth = fovea(x, smooth_param=smooth)
        jax.block_until_ready((out_plain, out_smooth))

        assert jnp.allclose(out_plain, fovea_ref(x, None), atol=1e-3, rtol=1e-3), shape
        assert jnp.allclose(out_smooth, fovea_ref(x, smooth), atol=1e-3, rtol=1e-3), shape

    print("KERNEL_OK")
</pallas_src>

<mosaic_0001>
module attributes {stable_mosaic.version = 11 : i64} {
  func.func @_fovea_kernel_plain(%arg0: i32, %arg1: memref<8x256xf32, #tpu.memory_space<vmem>>, %arg2: memref<8x256xf32, #tpu.memory_space<vmem>>) attributes {dimension_semantics = [#tpu.dimension_semantics<parallel>], iteration_bounds = array<i64: 1>, scalar_prefetch = 0 : i64, scratch_operands = 0 : i64, tpu.core_type = #tpu.core_type<tc>, window_params = [{transform_indices = @transform_0, window_bounds = array<i64: 8, 256>}, {transform_indices = @transform_1, window_bounds = array<i64: 8, 256>}]} {
    %c0 = arith.constant 0 : index
    %c0_0 = arith.constant 0 : index
    %0 = vector.load %arg1[%c0, %c0_0] : memref<8x256xf32, #tpu.memory_space<vmem>>, vector<8x256xf32>
    %cst = arith.constant dense<0xFF800000> : vector<8xf32>
    %1 = vector.multi_reduction <maximumf>, %0, %cst [1] : vector<8x256xf32> to vector<8xf32>
    %2 = vector.shape_cast %1 : vector<8xf32> to vector<8x1xf32>
    %3 = vector.broadcast %2 : vector<8x1xf32> to vector<8x256xf32>
    %4 = arith.subf %0, %3 : vector<8x256xf32>
    %5 = math.exp %4 : vector<8x256xf32>
    %cst_1 = arith.constant dense<0.000000e+00> : vector<8xf32>
    %6 = vector.multi_reduction <add>, %5, %cst_1 [1] : vector<8x256xf32> to vector<8xf32>
    %7 = vector.shape_cast %6 : vector<8xf32> to vector<8x1xf32>
    %8 = vector.broadcast %7 : vector<8x1xf32> to vector<8x256xf32>
    %9 = arith.divf %5, %8 : vector<8x256xf32>
    %10 = arith.mulf %9, %0 : vector<8x256xf32>
    %c0_2 = arith.constant 0 : index
    %c0_3 = arith.constant 0 : index
    %11 = vector.load %arg2[%c0_2, %c0_3] : memref<8x256xf32, #tpu.memory_space<vmem>>, vector<8x256xf32>
    tpu.vector_store %arg2[%c0_2, %c0_3], %10 {strides = array<i32>} : memref<8x256xf32, #tpu.memory_space<vmem>>, vector<8x256xf32>,
    return
  }
  func.func @transform_0(%arg0: i32) -> (i32, i32) {
    %c0_i32 = arith.constant 0 : i32
    %c0_i32_0 = arith.constant 0 : i32
    return %arg0, %c0_i32 : i32, i32
  }
  func.func @transform_1(%arg0: i32) -> (i32, i32) {
    %c0_i32 = arith.constant 0 : i32
    %c0_i32_0 = arith.constant 0 : i32
    return %arg0, %c0_i32 : i32, i32
  }
}

</mosaic_0001>

<llo_original>
// kernel: tpu_custom_call.1
$region0: #{tpu_custom_call.1}
  #allocation0 [shape = 'u32[]', space=smem, size = 0x4, offset = 0x4, fixed_abs, tag = 'smem constant byte address 0x4 - core index']
  #allocation1 [shape = 'u32[144,128]{1,0:T(1,128)}', space=vmem, size = 0x12000, scoped, tag = 'internal scratch']
  %s0 = inlined_call_operand.hbm [shape: f32[8,256], index: 0, kind: input, shape index: {}]
  %s1 = inlined_call_operand.hbm [shape: f32[8,256], index: 1, kind: output, shape index: {}]
  %s2 = sld [smem:[#allocation0]]
  $region18: #{tpu_custom_call.1} parent=0
    _
  %s4 = ssub.s32 1, %s2
  %s5 = scalar_select 0, %s4, %s2
  $region1: #{tpu_custom_call.1} parent=0
    #allocation2 [shape = 'u8[8192]{0}', space=vmem, size = 0x2000, scoped, tag = 'input window, operand 0, single buffered']
    #allocation3 [shape = 's32[1]{0}', space=sflag, size = 0x4, scoped, tag = 'scoped memory for tpu_custom_call.1']
    #allocation4 [shape = 's32[1]{0}', space=sflag, size = 0x4, scoped, tag = 'scoped memory for tpu_custom_call.1']
    #allocation5 [shape = 'u8[8192]{0}', space=vmem, size = 0x2000, scoped, tag = 'output window, operand 0, single buffered']
    %6 = vsyncpa [#allocation3], 0
    %7 = vsyncpa [#allocation4], 0
    // Predicated region
    $region2: #{tpu_custom_call.1} parent=1 // pred_check
      _
    $region3: #{tpu_custom_call.1} parent=1 // pred_check_branch
      %9 = sbr.rel (0) target = $region5
    $region4: #{tpu_custom_call.1} parent=1 // pred_region
      %s11 = ssub.s32 256, 256
      %12 = vsyncadd [#allocation3], %s11
      %s14 = sshll.u32 [#allocation2], 4
      %s15 = int_to_ptr.vmem [resolvable:$true] %s14
      %17 = dma.hbm_to_vmem [thread:$0]  %s0, 256, %s15, [#allocation3]
    $region5: #{tpu_custom_call.1} parent=1 // pred_fallthru
      _
    // Predicated region
    $region6: #{tpu_custom_call.1} parent=1 // pred_check
      _
    $region7: #{tpu_custom_call.1} parent=1 // pred_check_branch
      %19 = sbr.rel (0) target = $region9
    $region8: #{tpu_custom_call.1} parent=1 // pred_region
      %20 = dma.done [#allocation3], 256
    $region9: #{tpu_custom_call.1} parent=1 // pred_fallthru
      _
    %v21 = vld [vmem:[#allocation2] sm:$0xff]
    %v22 = vld [vmem:[#allocation2 + $0x8] sm:$0xff]
    %v23 = vmax.f32 %v21, %v22
    %24 = vmax.xlane.f32.xlu0 %v23
    %v25 = vpop.xlane.xlu0 %24
    %v26 = vsub.f32 %v21, %v25
    %v27 = vsub.f32 %v22, %v25
    %v28 = vmul.f32 %v26, 1.442695
    %v29 = vpow.pop %v28
    %v30 = vmul.f32 %v27, 1.442695
    %v31 = vpow.pop %v30
    %v32 = vadd.f32 %v29, %v31
    %33 = vadd.xlane.f32.xlu0 %v32
    %v34 = vpop.xlane.xlu0 %33
    %v35 = vrcp.pop %v34
    %v36 = vmul.f32 %v29, %v35
    %v37 = vmul.f32 %v31, %v35
    %v38 = vmul.f32 %v36, %v21
    %v39 = vmul.f32 %v37, %v22
    %40 = vst [vmem:[#allocation5] sm:$0xff] %v38
    %41 = vst [vmem:[#allocation5 + $0x8] sm:$0xff] %v39
    // Predicated region
    $region10: #{tpu_custom_call.1} parent=1 // pred_check
      _
    $region11: #{tpu_custom_call.1} parent=1 // pred_check_branch
      %43 = sbr.rel (0) target = $region13
    $region12: #{tpu_custom_call.1} parent=1 // pred_region
      %s45 = ssub.s32 256, 256
      %46 = vsyncadd [#allocation4], %s45
      %s48 = sshll.u32 [#allocation5], 4
      %s49 = int_to_ptr.vmem [resolvable:$true] %s48
      %51 = dma.vmem_to_hbm [thread:$0]  %s49, 256, %s1, [#allocation4]
    $region13: #{tpu_custom_call.1} parent=1 // pred_fallthru
      _
    // Predicated region
    $region14: #{tpu_custom_call.1} parent=1 // pred_check
      _
    $region15: #{tpu_custom_call.1} parent=1 // pred_check_branch
      %53 = sbr.rel (0) target = $region17
    $region16: #{tpu_custom_call.1} parent=1 // pred_region
      %54 = dma.done [#allocation4], 256
    $region17: #{tpu_custom_call.1} parent=1 // pred_fallthru
      _
    %55 = vsyncpa [#allocation3], 1
    %56 = vsyncpa [#allocation4], 1

</llo_original>
